<compile_context>
chip_gen: v7x
topology: tpu7x:2x2x1
jax: 0.10.0
libtpu: 0.0.40
codegen_flags: <defaults>
</compile_context>

<pallas_src>
import functools

import jax
import jax.numpy as jnp
from jax.experimental import pallas as pl
from jax.experimental.pallas import tpu as pltpu

_LANE = 128


def _contrastive_kernel(z1_ref, z2_ref, lab_ref, out_ref, *, margin):
    # Native-dtype tiles from the pipeline; all math in f32.
    z1 = z1_ref[...].astype(jnp.float32)                    # (tile_b, D)
    z2 = z2_ref[...].astype(jnp.float32)                    # (tile_b, D)
    lab = lab_ref[...]                                      # (tile_b, 1) f32

    # Per-row dot product over the feature (lane) axis.
    cos_sim = jnp.sum(z1 * z2, axis=1, keepdims=True)       # (tile_b, 1)
    dist = 1.0 - cos_sim
    hinge = jnp.maximum(margin - dist, 0.0)
    out_ref[...] = lab * (dist * dist) + (1.0 - lab) * (hinge * hinge)


def _vmem_capacity_bytes():
    # Generation query; assume the smallest current part (v7x: 64 MiB per
    # TensorCore) if the query is unavailable, so we never over-subscribe VMEM.
    try:
        cap = getattr(pltpu.get_tpu_info(), "vmem_capacity_bytes", None)
        if cap:
            return int(cap)
    except Exception:
        pass
    return 64 * 1024 * 1024


def _vmem_limit_bytes():
    cap = _vmem_capacity_bytes()
    if cap >= (96 << 20):
        return 64 << 20          # v5e / v6e class (128 MiB physical VMEM)
    return 48 << 20              # v7x class (64 MiB physical per TensorCore)


def _choose_tile_b(D, itemsize, vmem_limit):
    # Budget the double-buffered z1/z2 pipeline windows at native width plus
    # the in-kernel f32 up-cast temporaries (live once, not per buffer), with
    # ~8 MiB headroom for label/out buffers and compiler scratch.
    budget = vmem_limit - (8 << 20)
    cast = 2 * D * 4 if itemsize < 4 else 0
    per_row = 2 * 2 * D * itemsize + cast
    tb_cap = budget // per_row
    # Target >= ~4 MiB of fresh input bytes per grid step so the ~0.35 us
    # fixed per-step pipeline overhead stays small even at 3.2 TB/s HBM.
    tb_target = pl.cdiv(4 << 20, 2 * D * itemsize)
    tb = min(tb_cap, max(512, tb_target), 16384)
    tb = max(16, (tb // 16) * 16)      # dtype-safe sublane multiple
    return int(tb)


def contrastive_loss(z1, z2, label, *, margin=0.5, reduction="mean", tile_b=None):
    assert reduction in ("mean", "sum", "none")
    B, D = z1.shape
    assert z2.shape == (B, D)

    itemsize = jnp.dtype(z1.dtype).itemsize
    vmem_limit = _vmem_limit_bytes()
    if tile_b is None:
        tile_b = _choose_tile_b(D, itemsize, vmem_limit)
    tile_b = int(tile_b)
    if tile_b >= B:
        tile_b = B                                   # single full-dim block (always legal)
    else:
        # Round to a dtype-safe sublane multiple (16 covers f32's 8 and bf16's 16).
        tile_b = max(16, (tile_b // 16) * 16)
        if tile_b >= B:
            tile_b = B

    num_tiles = pl.cdiv(B, tile_b)
    lab_col = label.astype(jnp.float32).reshape(B, 1)

    out = pl.pallas_call(
        functools.partial(_contrastive_kernel, margin=float(margin)),
        out_shape=jax.ShapeDtypeStruct((B, 1), jnp.float32),
        grid=(num_tiles,),
        in_specs=[
            pl.BlockSpec((tile_b, D), lambda i: (i, 0)),
            pl.BlockSpec((tile_b, D), lambda i: (i, 0)),
            pl.BlockSpec((tile_b, 1), lambda i: (i, 0)),
        ],
        out_specs=pl.BlockSpec((tile_b, 1), lambda i: (i, 0)),
        compiler_params=pltpu.CompilerParams(
            dimension_semantics=("parallel",),
            vmem_limit_bytes=int(vmem_limit),
        ),
    )(z1, z2, lab_col)

    loss = out[:, 0]                          # (B,) per-sample losses
    if reduction == "none":
        return loss                           # matches PyTorch: per-sample loss, shape (B,)
    total = jnp.sum(loss)
    if reduction == "mean":
        return total / float(B)               # matches PyTorch: scalar
    return total


def _reference(z1, z2, label, margin=0.5, reduction="mean"):
    z1 = z1.astype(jnp.float32)
    z2 = z2.astype(jnp.float32)
    label = label.astype(jnp.float32)
    cos_sim = jnp.sum(z1 * z2, axis=1)
    dist = 1.0 - cos_sim
    loss = label * dist ** 2 + (1.0 - label) * jnp.maximum(margin - dist, 0.0) ** 2
    if reduction == "mean":
        return loss.mean()
    if reduction == "sum":
        return loss.sum()
    return loss


if __name__ == "__main__":
    key = jax.random.PRNGKey(0)
    k1, k2, k3 = jax.random.split(key, 3)

    failures = []

    def run_case(B, D, dtype, tile_b, margin, tol):
        z1 = jax.random.normal(k1, (B, D), dtype=jnp.float32)
        z2 = jax.random.normal(k2, (B, D), dtype=jnp.float32)
        z1 = (z1 / jnp.linalg.norm(z1, axis=1, keepdims=True)).astype(dtype)
        z2 = (z2 / jnp.linalg.norm(z2, axis=1, keepdims=True)).astype(dtype)
        label = (jax.random.uniform(k3, (B,)) > 0.5).astype(jnp.float32)
        for reduction in ("mean", "sum", "none"):
            out = jax.block_until_ready(
                contrastive_loss(z1, z2, label, margin=margin,
                                 reduction=reduction, tile_b=tile_b))
            ref = _reference(z1, z2, label, margin=margin, reduction=reduction)
            if not jnp.allclose(out, ref, atol=tol, rtol=tol):
                failures.append(
                    f"B={B} D={D} dtype={dtype} tile_b={tile_b} margin={margin} "
                    f"reduction={reduction}")

    # Multi-tile grid, B divisible by the tile.
    run_case(B=256, D=128, dtype=jnp.float32, tile_b=128, margin=0.5, tol=1e-4)
    # Auto tile (clamps to a single full-dim block), margin > 1.
    run_case(B=200, D=128, dtype=jnp.float32, tile_b=None, margin=1.5, tol=1e-4)
    # bf16 inputs, ragged last block (320 = 2*128 + 64); margin > 1 makes any
    # unclipped garbage tail row visible in the sum, so this checks OOB-write
    # clipping of the last block.
    run_case(B=320, D=128, dtype=jnp.bfloat16, tile_b=128, margin=1.5, tol=1e-3)

    if failures:
        for f in failures:
            print("MISMATCH:", f)
    else:
        print("KERNEL_OK")
</pallas_src>

<mosaic_0001>
module attributes {stable_mosaic.version = 11 : i64} {
  func.func @_contrastive_kernel(%arg0: i32, %arg1: memref<128x128xf32, #tpu.memory_space<vmem>>, %arg2: memref<128x128xf32, #tpu.memory_space<vmem>>, %arg3: memref<128x1xf32, #tpu.memory_space<vmem>>, %arg4: memref<128x1xf32, #tpu.memory_space<vmem>>) attributes {dimension_semantics = [#tpu.dimension_semantics<parallel>], iteration_bounds = array<i64: 2>, scalar_prefetch = 0 : i64, scratch_operands = 0 : i64, tpu.core_type = #tpu.core_type<tc>, window_params = [{transform_indices = @transform_0, window_bounds = array<i64: 128, 128>}, {transform_indices = @transform_1, window_bounds = array<i64: 128, 128>}, {transform_indices = @transform_2, window_bounds = array<i64: 128, 1>}, {transform_indices = @transform_3, window_bounds = array<i64: 128, 1>}]} {
    %c0 = arith.constant 0 : index
    %c0_0 = arith.constant 0 : index
    %0 = vector.load %arg1[%c0, %c0_0] : memref<128x128xf32, #tpu.memory_space<vmem>>, vector<128x128xf32>
    %c0_1 = arith.constant 0 : index
    %c0_2 = arith.constant 0 : index
    %1 = vector.load %arg2[%c0_1, %c0_2] : memref<128x128xf32, #tpu.memory_space<vmem>>, vector<128x128xf32>
    %c0_3 = arith.constant 0 : index
    %c0_4 = arith.constant 0 : index
    %2 = vector.load %arg3[%c0_3, %c0_4] : memref<128x1xf32, #tpu.memory_space<vmem>>, vector<128x1xf32>
    %3 = arith.mulf %0, %1 : vector<128x128xf32>
    %cst = arith.constant dense<0.000000e+00> : vector<128xf32>
    %4 = vector.multi_reduction <add>, %3, %cst [1] : vector<128x128xf32> to vector<128xf32>
    %5 = vector.shape_cast %4 : vector<128xf32> to vector<128x1xf32>
    %cst_5 = arith.constant 1.000000e+00 : f32
    %6 = vector.broadcast %cst_5 : f32 to vector<128x1xf32>
    %7 = arith.subf %6, %5 : vector<128x1xf32>
    %cst_6 = arith.constant 5.000000e-01 : f32
    %8 = vector.broadcast %cst_6 : f32 to vector<128x1xf32>
    %9 = arith.subf %8, %7 : vector<128x1xf32>
    %cst_7 = arith.constant 0.000000e+00 : f32
    %10 = vector.broadcast %cst_7 : f32 to vector<128x1xf32>
    %11 = arith.maximumf %9, %10 : vector<128x1xf32>
    %12 = arith.mulf %7, %7 : vector<128x1xf32>
    %13 = arith.mulf %2, %12 : vector<128x1xf32>
    %cst_8 = arith.constant 1.000000e+00 : f32
    %14 = vector.broadcast %cst_8 : f32 to vector<128x1xf32>
    %15 = arith.subf %14, %2 : vector<128x1xf32>
    %16 = arith.mulf %11, %11 : vector<128x1xf32>
    %17 = arith.mulf %15, %16 : vector<128x1xf32>
    %18 = arith.addf %13, %17 : vector<128x1xf32>
    %c0_9 = arith.constant 0 : index
    %c0_10 = arith.constant 0 : index
    %19 = vector.load %arg4[%c0_9, %c0_10] : memref<128x1xf32, #tpu.memory_space<vmem>>, vector<128x1xf32>
    tpu.vector_store %arg4[%c0_9, %c0_10], %18 {strides = array<i32>} : memref<128x1xf32, #tpu.memory_space<vmem>>, vector<128x1xf32>,
    return
  }
  func.func @transform_0(%arg0: i32) -> (i32, i32) {
    %c0_i32 = arith.constant 0 : i32
    %c0_i32_0 = arith.constant 0 : i32
    return %arg0, %c0_i32 : i32, i32
  }
  func.func @transform_1(%arg0: i32) -> (i32, i32) {
    %c0_i32 = arith.constant 0 : i32
    %c0_i32_0 = arith.constant 0 : i32
    return %arg0, %c0_i32 : i32, i32
  }
  func.func @transform_2(%arg0: i32) -> (i32, i32) {
    %c0_i32 = arith.constant 0 : i32
    %c0_i32_0 = arith.constant 0 : i32
    return %arg0, %c0_i32 : i32, i32
  }
  func.func @transform_3(%arg0: i32) -> (i32, i32) {
    %c0_i32 = arith.constant 0 : i32
    %c0_i32_0 = arith.constant 0 : i32
    return %arg0, %c0_i32 : i32, i32
  }
}

</mosaic_0001>

<llo_original>
// kernel: tpu_custom_call.1
$region0: #{tpu_custom_call.1}
  #allocation0 [shape = 'u32[]', space=smem, size = 0x4, offset = 0x4, fixed_abs, tag = 'smem constant byte address 0x4 - core index']
  #allocation1 [shape = 'u32[144,128]{1,0:T(1,128)}', space=vmem, size = 0x12000, scoped, tag = 'internal scratch']
  %s0 = inlined_call_operand.vmem [shape: f32[256,128], index: 0, kind: input, shape index: {}]
  %s1 = inlined_call_operand.hbm [shape: f32[256,128], index: 1, kind: input, shape index: {}]
  %s2 = inlined_call_operand.vmem [shape: f32[256,1], index: 2, kind: input, shape index: {}]
  %s3 = inlined_call_operand.vmem [shape: f32[256,1], index: 3, kind: output, shape index: {}]
  %s4 = sld [smem:[#allocation0]]
  $region49: #{tpu_custom_call.1} parent=0
    _
  %s6 = ssub.s32 1, %s4
  %s7 = scalar_select 0, %s6, %s4
  $region1: #{tpu_custom_call.1} parent=0
    #allocation2 [shape = 'u8[131072]{0}', space=vmem, size = 0x20000, scoped, tag = 'input window, operand 1']
    #allocation3 [shape = 's32[2]{0}', space=sflag, size = 0x8, scoped, tag = 'scoped memory for tpu_custom_call.1']
    %8 = vsyncpa [#allocation3], 0
    %s9 = scalar_lea.sflag [#allocation3], 1
    %10 = vsyncpa %s9, 0
    loop: start=0, step=1, limit=4
    $region2: #{tpu_custom_call.1} parent=1 // loop_pre_header
      _
    $region3: #{tpu_custom_call.1} parent=1 // loop_header
      %s12 = sphi 0, %s16
      %p13 = scmp.ge.s32.totalorder %s12, 4
      %s22 = sphi 0, %s24
      %s25 = sphi 0, %s22
      %s26 = sphi 0, %s25
      %s42 = sphi 0, %s26
      %s48 = sphi 0, %s50
      %s51 = sphi 0, %s48
      %s52 = sphi 0, %s51
      %s68 = sphi 0, %s52
      %s74 = sphi 0, %s76
      %s77 = sphi 0, %s74
      %s78 = sphi 0, %s77
      %s94 = sphi 0, %s78
      %s100 = sphi 0, %s102
      %s103 = sphi 0, %s100
      %s104 = sphi 0, %s103
      %s120 = sphi 0, %s104
    $region4: #{tpu_custom_call.1} parent=1 // loop_header_branch
      %15 = sbr.rel (%p13) target = $region8
    $region5: #{tpu_custom_call.1} parent=1 // loop_body
      %s17 = ssub.s32 %s12, 1
      %s18 = ssub.s32 %s12, 2
      %s19 = sadd.s32 %s12, 1
      %s20 = ssub.s32 %s12, %s19
      %p21 = scmp.eq.s32.totalorder %s20, 0
      %s23 = sadd.s32 %s22, 1
      %s24 = scalar_select %p21, %s22, %s23
      %p27 = pneg %p21
      %p28 = scmp.eq.s32.totalorder %s12, 1
      %p29 = por %p27, %p28
      %p30 = scmp.ne.s32.totalorder %s22, %s25
      %p31 = scmp.eq.s32.totalorder %s12, 0
      %p32 = por %p30, %p31
      %p33 = scmp.ne.s32.totalorder %s22, %s25
      %p34 = scmp.eq.s32.totalorder %s17, 1
      %p35 = por %p33, %p34
      %p36 = scmp.ne.s32.totalorder %s25, %s26
      %p37 = scmp.eq.s32.totalorder %s17, 0
      %p38 = por %p36, %p37
      %p39 = scmp.ne.s32.totalorder %s25, %s26
      %p40 = scmp.eq.s32.totalorder %s18, 1
      %p41 = por %p39, %p40
      %p43 = scmp.ne.s32.totalorder %s26, %s42
      %p44 = scmp.eq.s32.totalorder %s18, 0
      %p45 = por %p43, %p44
      %s46 = ssub.s32 %s12, %s19
      %p47 = scmp.eq.s32.totalorder %s46, 0
      %s49 = sadd.s32 %s48, 1
      %s50 = scalar_select %p47, %s48, %s49
      %p53 = pneg %p47
      %p54 = scmp.eq.s32.totalorder %s12, 1
      %p55 = por %p53, %p54
      %p56 = scmp.ne.s32.totalorder %s48, %s51
      %p57 = scmp.eq.s32.totalorder %s12, 0
      %p58 = por %p56, %p57
      %p59 = scmp.ne.s32.totalorder %s48, %s51
      %p60 = scmp.eq.s32.totalorder %s17, 1
      %p61 = por %p59, %p60
      %p62 = scmp.ne.s32.totalorder %s51, %s52
      %p63 = scmp.eq.s32.totalorder %s17, 0
      %p64 = por %p62, %p63
      %p65 = scmp.ne.s32.totalorder %s51, %s52
      %p66 = scmp.eq.s32.totalorder %s18, 1
      %p67 = por %p65, %p66
      %p69 = scmp.ne.s32.totalorder %s52, %s68
      %p70 = scmp.eq.s32.totalorder %s18, 0
      %p71 = por %p69, %p70
      %s72 = ssub.s32 %s12, %s19
      %p73 = scmp.eq.s32.totalorder %s72, 0
      %s75 = sadd.s32 %s74, 1
      %s76 = scalar_select %p73, %s74, %s75
      %p79 = pneg %p73
      %p80 = scmp.eq.s32.totalorder %s12, 1
      %p81 = por %p79, %p80
      %p82 = scmp.ne.s32.totalorder %s74, %s77
      %p83 = scmp.eq.s32.totalorder %s12, 0
      %p84 = por %p82, %p83
      %p85 = scmp.ne.s32.totalorder %s74, %s77
      %p86 = scmp.eq.s32.totalorder %s17, 1
      %p87 = por %p85, %p86
      %p88 = scmp.ne.s32.totalorder %s77, %s78
      %p89 = scmp.eq.s32.totalorder %s17, 0
      %p90 = por %p88, %p89
      %p91 = scmp.ne.s32.totalorder %s77, %s78
      %p92 = scmp.eq.s32.totalorder %s18, 1
      %p93 = por %p91, %p92
      %p95 = scmp.ne.s32.totalorder %s78, %s94
      %p96 = scmp.eq.s32.totalorder %s18, 0
      %p97 = por %p95, %p96
      %s98 = ssub.s32 %s12, %s19
      %p99 = scmp.eq.s32.totalorder %s98, 0
      %s101 = sadd.s32 %s100, 1
      %s102 = scalar_select %p99, %s100, %s101
      %p105 = pneg %p99
      %p106 = scmp.eq.s32.totalorder %s12, 1
      %p107 = por %p105, %p106
      %p108 = scmp.ne.s32.totalorder %s100, %s103
      %p109 = scmp.eq.s32.totalorder %s12, 0
      %p110 = por %p108, %p109
      %p111 = scmp.ne.s32.totalorder %s100, %s103
      %p112 = scmp.eq.s32.totalorder %s17, 1
      %p113 = por %p111, %p112
      %p114 = scmp.ne.s32.totalorder %s103, %s104
      %p115 = scmp.eq.s32.totalorder %s17, 0
      %p116 = por %p114, %p115
      %p117 = scmp.ne.s32.totalorder %s103, %s104
      %p118 = scmp.eq.s32.totalorder %s18, 1
      %p119 = por %p117, %p118
      %p121 = scmp.ne.s32.totalorder %s104, %s120
      %p122 = scmp.eq.s32.totalorder %s18, 0
      %p123 = por %p121, %p122
      %p124 = scmp.le.s32.totalorder 1, %s12
      %p125 = scmp.lt.s32.totalorder %s12, 3
      %p126 = pnand %p124, %p125
      %p127 = pneg %p126
      // Predicated region
      $region9: #{tpu_custom_call.1} parent=5 // pred_check
        _
      $region10: #{tpu_custom_call.1} parent=5 // pred_check_branch
        %129 = sbr.rel (%p126) target = $region12
      $region11: #{tpu_custom_call.1} parent=5 // pred_region
        %s130 = ssub.s32 %s12, 1
      $region12: #{tpu_custom_call.1} parent=5 // pred_fallthru
        _
      %p131 = scmp.lt.s32.totalorder %s12, 2
      // Predicated region
      $region13: #{tpu_custom_call.1} parent=5 // pred_check
        %p132 = pneg %p131
      $region14: #{tpu_custom_call.1} parent=5 // pred_check_branch
        %134 = sbr.rel (%p132) target = $region16
      $region15: #{tpu_custom_call.1} parent=5 // pred_region
        // Predicated region
        $region17: #{tpu_custom_call.1} parent=15 // pred_check
          %p135 = pneg %p32
        $region18: #{tpu_custom_call.1} parent=15 // pred_check_branch
          %137 = sbr.rel (%p135) target = $region20
        $region19: #{tpu_custom_call.1} parent=15 // pred_region
          %s138 = smul.u32 16, %s12
          %p139 = scmp.lt.s32.totalorder %s138, 31
          %s140 = scalar_select %p139, %s138, 31
          %s141 = smul.addr %s140, 8
          %s142 = scalar_lea.vmem %s0, %s141
          %s143 = smul.u32 16, %s12
        $region20: #{tpu_custom_call.1} parent=15 // pred_fallthru
          _
        // Predicated region
        $region21: #{tpu_custom_call.1} parent=15 // pred_check
          %p144 = pneg %p58
        $region22: #{tpu_custom_call.1} parent=15 // pred_check_branch
          %146 = sbr.rel (%p144) target = $region24
        $region23: #{tpu_custom_call.1} parent=15 // pred_region
          %s147 = sand.u32 %s48, 1
          %s148 = scalar_lea.sflag [#allocation3], %s147
          %s149 = sand.u32 %s48, 1
          %s150 = smul.addr %s149, 128
          %s151 = scalar_lea.vmem [#allocation2], %s150
          %s152 = smul.u32 16, %s12
          %s154 = ssub.s32 2048, 2048
          %155 = vsyncadd %s148, %s154
          %s156 = smul.addr %s152, 128
          %s157 = scalar_lea.hbm %s1, %s156
          %s158 = sshll.u32 %s151, 4
          %s159 = int_to_ptr.vmem [resolvable:$true] %s158
          %164 = dma.hbm_to_vmem [thread:$0]  %s157, 2048, %s159, %s148, 128, 128, 8
        $region24: #{tpu_custom_call.1} parent=15 // pred_fallthru
          _
        // Predicated region
        $region25: #{tpu_custom_call.1} parent=15 // pred_check
          %p165 = pneg %p84
        $region26: #{tpu_custom_call.1} parent=15 // pred_check_branch
          %167 = sbr.rel (%p165) target = $region28
        $region27: #{tpu_custom_call.1} parent=15 // pred_region
          %s168 = smul.u32 16, %s12
          %p169 = scmp.lt.s32.totalorder %s168, 31
          %s170 = scalar_select %p169, %s168, 31
          %s171 = smul.addr %s170, 8
          %s172 = scalar_lea.vmem %s2, %s171
          %s173 = smul.u32 16, %s12
        $region28: #{tpu_custom_call.1} parent=15 // pred_fallthru
          _
      $region16: #{tpu_custom_call.1} parent=5 // pred_fallthru
        _
      %p174 = scmp.le.s32.totalorder 1, %s12
      %p175 = scmp.lt.s32.totalorder %s12, 3
      %p176 = pnand %p174, %p175
      %p177 = pneg %p176
      // Predicated region
      $region29: #{tpu_custom_call.1} parent=5 // pred_check
        _
      $region30: #{tpu_custom_call.1} parent=5 // pred_check_branch
        %179 = sbr.rel (%p176) target = $region32
      $region31: #{tpu_custom_call.1} parent=5 // pred_region
        %s180 = ssub.s32 %s12, 1
        %s181 = sand.u32 %s51, 1
        %s182 = scalar_lea.sflag [#allocation3], %s181
        %s183 = sand.u32 %s51, 1
        %s184 = smul.addr %s183, 128
        %s185 = scalar_lea.vmem [#allocation2], %s184
        // Predicated region
        $region33: #{tpu_custom_call.1} parent=31 // pred_check
          %p186 = pneg %p64
        $region34: #{tpu_custom_call.1} parent=31 // pred_check_branch
          %188 = sbr.rel (%p186) target = $region36
        $region35: #{tpu_custom_call.1} parent=31 // pred_region
          %189 = dma.done %s182, 2048
        $region36: #{tpu_custom_call.1} parent=31 // pred_fallthru
          _
        %s190 = smul.u32 16, %s17
        %p191 = scmp.lt.s32.totalorder %s190, 31
        %s192 = scalar_select %p191, %s190, 31
        %s193 = smul.addr %s192, 8
        %s194 = scalar_lea.vmem %s0, %s193
        %p195 = pneg %p38
        %p196 = pneg %p35
        %s197 = sand.u32 %s51, 1
        %s198 = scalar_lea.sflag [#allocation3], %s197
        %s199 = sand.u32 %s51, 1
        %s200 = smul.addr %s199, 128
        %s201 = scalar_lea.vmem [#allocation2], %s200
        %p202 = pneg %p64
        %p203 = pneg %p61
        %s204 = smul.u32 16, %s17
        %p205 = scmp.lt.s32.totalorder %s204, 31
        %s206 = scalar_select %p205, %s204, 31
        %s207 = smul.addr %s206, 8
        %s208 = scalar_lea.vmem %s2, %s207
        %p209 = pneg %p90
        %p210 = pneg %p87
        %p211 = pneg %p116
        %p212 = pneg %p113
        %s213 = smul.u32 16, %s17
        %p214 = scmp.lt.s32.totalorder %s213, 31
        %s215 = scalar_select %p214, %s213, 31
        %s216 = smul.addr %s215, 8
        %s217 = scalar_lea.vmem %s3, %s216
        %s218 = smul.u32 16, %s17
        %p219 = scmp.lt.s32.totalorder %s218, 31
        %s220 = scalar_select %p219, %s218, 31
        %s221 = smul.addr %s220, 8
        %s222 = scalar_lea.vmem %s0, %s221
        %s223 = smul.u32 16, %s17
        %s224 = smul.u32 16, %s17
        %s225 = smul.u32 16, %s17
        %p226 = scmp.lt.s32.totalorder %s225, 31
        %s227 = scalar_select %p226, %s225, 31
        %s228 = smul.addr %s227, 8
        %s229 = scalar_lea.vmem %s2, %s228
        %s230 = smul.u32 16, %s17
        %s231 = smul.u32 16, %s17
        %p232 = scmp.lt.s32.totalorder %s231, 31
        %s233 = scalar_select %p232, %s231, 31
        %s234 = smul.addr %s233, 8
        %s235 = scalar_lea.vmem %s3, %s234
        %s236 = smul.u32 16, %s17
        %v237 = vld [vmem:[%s222] sm:$0xff]
        %v238 = vld [vmem:[%s222 + $0x8] sm:$0xff]
        %v239 = vld [vmem:[%s222 + $0x10] sm:$0xff]
        %v240 = vld [vmem:[%s222 + $0x18] sm:$0xff]
        %v241 = vld [vmem:[%s222 + $0x20] sm:$0xff]
        %v242 = vld [vmem:[%s222 + $0x28] sm:$0xff]
        %v243 = vld [vmem:[%s222 + $0x30] sm:$0xff]
        %v244 = vld [vmem:[%s222 + $0x38] sm:$0xff]
        %v245 = vld [vmem:[%s222 + $0x40] sm:$0xff]
        %v246 = vld [vmem:[%s222 + $0x48] sm:$0xff]
        %v247 = vld [vmem:[%s222 + $0x50] sm:$0xff]
        %v248 = vld [vmem:[%s222 + $0x58] sm:$0xff]
        %v249 = vld [vmem:[%s222 + $0x60] sm:$0xff]
        %v250 = vld [vmem:[%s222 + $0x68] sm:$0xff]
        %v251 = vld [vmem:[%s222 + $0x70] sm:$0xff]
        %v252 = vld [vmem:[%s222 + $0x78] sm:$0xff]
        %v253 = vld [vmem:[%s185] sm:$0xff]
        %v254 = vld [vmem:[%s185 + $0x8] sm:$0xff]
        %v255 = vld [vmem:[%s185 + $0x10] sm:$0xff]
        %v256 = vld [vmem:[%s185 + $0x18] sm:$0xff]
        %v257 = vld [vmem:[%s185 + $0x20] sm:$0xff]
        %v258 = vld [vmem:[%s185 + $0x28] sm:$0xff]
        %v259 = vld [vmem:[%s185 + $0x30] sm:$0xff]
        %v260 = vld [vmem:[%s185 + $0x38] sm:$0xff]
        %v261 = vld [vmem:[%s185 + $0x40] sm:$0xff]
        %v262 = vld [vmem:[%s185 + $0x48] sm:$0xff]
        %v263 = vld [vmem:[%s185 + $0x50] sm:$0xff]
        %v264 = vld [vmem:[%s185 + $0x58] sm:$0xff]
        %v265 = vld [vmem:[%s185 + $0x60] sm:$0xff]
        %v266 = vld [vmem:[%s185 + $0x68] sm:$0xff]
        %v267 = vld [vmem:[%s185 + $0x70] sm:$0xff]
        %v268 = vld [vmem:[%s185 + $0x78] sm:$0xff]
        %v269 = vld [vmem:[%s229] sm:$0xff]
        %v270 = vld [vmem:[%s229 + $0x8] sm:$0xff]
        %v271 = vld [vmem:[%s229 + $0x10] sm:$0xff]
        %v272 = vld [vmem:[%s229 + $0x18] sm:$0xff]
        %v273 = vld [vmem:[%s229 + $0x20] sm:$0xff]
        %v274 = vld [vmem:[%s229 + $0x28] sm:$0xff]
        %v275 = vld [vmem:[%s229 + $0x30] sm:$0xff]
        %v276 = vld [vmem:[%s229 + $0x38] sm:$0xff]
        %v277 = vld [vmem:[%s229 + $0x40] sm:$0xff]
        %v278 = vld [vmem:[%s229 + $0x48] sm:$0xff]
        %v279 = vld [vmem:[%s229 + $0x50] sm:$0xff]
        %v280 = vld [vmem:[%s229 + $0x58] sm:$0xff]
        %v281 = vld [vmem:[%s229 + $0x60] sm:$0xff]
        %v282 = vld [vmem:[%s229 + $0x68] sm:$0xff]
        %v283 = vld [vmem:[%s229 + $0x70] sm:$0xff]
        %v284 = vld [vmem:[%s229 + $0x78] sm:$0xff]
        %v285 = vmul.f32 %v237, %v253
        %v286 = vmul.f32 %v238, %v254
        %v287 = vmul.f32 %v239, %v255
        %v288 = vmul.f32 %v240, %v256
        %v289 = vmul.f32 %v241, %v257
        %v290 = vmul.f32 %v242, %v258
        %v291 = vmul.f32 %v243, %v259
        %v292 = vmul.f32 %v244, %v260
        %v293 = vmul.f32 %v245, %v261
        %v294 = vmul.f32 %v246, %v262
        %v295 = vmul.f32 %v247, %v263
        %v296 = vmul.f32 %v248, %v264
        %v297 = vmul.f32 %v249, %v265
        %v298 = vmul.f32 %v250, %v266
        %v299 = vmul.f32 %v251, %v267
        %v300 = vmul.f32 %v252, %v268
        %301 = vadd.xlane.f32.xlu0 %v285
        %v302 = vpop.xlane.xlu0 %301
        %303 = vadd.xlane.f32.xlu0 %v286
        %v304 = vpop.xlane.xlu0 %303
        %305 = vadd.xlane.f32.xlu0 %v287
        %v306 = vpop.xlane.xlu0 %305
        %307 = vadd.xlane.f32.xlu0 %v288
        %v308 = vpop.xlane.xlu0 %307
        %309 = vadd.xlane.f32.xlu0 %v289
        %v310 = vpop.xlane.xlu0 %309
        %311 = vadd.xlane.f32.xlu0 %v290
        %v312 = vpop.xlane.xlu0 %311
        %313 = vadd.xlane.f32.xlu0 %v291
        %v314 = vpop.xlane.xlu0 %313
        %315 = vadd.xlane.f32.xlu0 %v292
        %v316 = vpop.xlane.xlu0 %315
        %317 = vadd.xlane.f32.xlu0 %v293
        %v318 = vpop.xlane.xlu0 %317
        %319 = vadd.xlane.f32.xlu0 %v294
        %v320 = vpop.xlane.xlu0 %319
        %321 = vadd.xlane.f32.xlu0 %v295
        %v322 = vpop.xlane.xlu0 %321
        %323 = vadd.xlane.f32.xlu0 %v296
        %v324 = vpop.xlane.xlu0 %323
        %325 = vadd.xlane.f32.xlu0 %v297
        %v326 = vpop.xlane.xlu0 %325
        %327 = vadd.xlane.f32.xlu0 %v298
        %v328 = vpop.xlane.xlu0 %327
        %329 = vadd.xlane.f32.xlu0 %v299
        %v330 = vpop.xlane.xlu0 %329
        %331 = vadd.xlane.f32.xlu0 %v300
        %v332 = vpop.xlane.xlu0 %331
        %v333 = vsub.f32 1.0, %v302
        %v334 = vsub.f32 1.0, %v304
        %v335 = vsub.f32 1.0, %v306
        %v336 = vsub.f32 1.0, %v308
        %v337 = vsub.f32 1.0, %v310
        %v338 = vsub.f32 1.0, %v312
        %v339 = vsub.f32 1.0, %v314
        %v340 = vsub.f32 1.0, %v316
        %v341 = vsub.f32 1.0, %v318
        %v342 = vsub.f32 1.0, %v320
        %v343 = vsub.f32 1.0, %v322
        %v344 = vsub.f32 1.0, %v324
        %v345 = vsub.f32 1.0, %v326
        %v346 = vsub.f32 1.0, %v328
        %v347 = vsub.f32 1.0, %v330
        %v348 = vsub.f32 1.0, %v332
        %v349 = vsub.f32 0.5, %v333
        %v350 = vsub.f32 0.5, %v334
        %v351 = vsub.f32 0.5, %v335
        %v352 = vsub.f32 0.5, %v336
        %v353 = vsub.f32 0.5, %v337
        %v354 = vsub.f32 0.5, %v338
        %v355 = vsub.f32 0.5, %v339
        %v356 = vsub.f32 0.5, %v340
        %v357 = vsub.f32 0.5, %v341
        %v358 = vsub.f32 0.5, %v342
        %v359 = vsub.f32 0.5, %v343
        %v360 = vsub.f32 0.5, %v344
        %v361 = vsub.f32 0.5, %v345
        %v362 = vsub.f32 0.5, %v346
        %v363 = vsub.f32 0.5, %v347
        %v364 = vsub.f32 0.5, %v348
        %v365 = vmax.f32 %v349, 0.0
        %v366 = vmax.f32 %v350, 0.0
        %v367 = vmax.f32 %v351, 0.0
        %v368 = vmax.f32 %v352, 0.0
        %v369 = vmax.f32 %v353, 0.0
        %v370 = vmax.f32 %v354, 0.0
        %v371 = vmax.f32 %v355, 0.0
        %v372 = vmax.f32 %v356, 0.0
        %v373 = vmax.f32 %v357, 0.0
        %v374 = vmax.f32 %v358, 0.0
        %v375 = vmax.f32 %v359, 0.0
        %v376 = vmax.f32 %v360, 0.0
        %v377 = vmax.f32 %v361, 0.0
        %v378 = vmax.f32 %v362, 0.0
        %v379 = vmax.f32 %v363, 0.0
        %v380 = vmax.f32 %v364, 0.0
        %v381 = vmul.f32 %v333, %v333
        %v382 = vmul.f32 %v334, %v334
        %v383 = vmul.f32 %v335, %v335
        %v384 = vmul.f32 %v336, %v336
        %v385 = vmul.f32 %v337, %v337
        %v386 = vmul.f32 %v338, %v338
        %v387 = vmul.f32 %v339, %v339
        %v388 = vmul.f32 %v340, %v340
        %v389 = vmul.f32 %v341, %v341
        %v390 = vmul.f32 %v342, %v342
        %v391 = vmul.f32 %v343, %v343
        %v392 = vmul.f32 %v344, %v344
        %v393 = vmul.f32 %v345, %v345
        %v394 = vmul.f32 %v346, %v346
        %v395 = vmul.f32 %v347, %v347
        %v396 = vmul.f32 %v348, %v348
        %v397 = vmul.f32 %v269, %v381
        %v398 = vmul.f32 %v270, %v382
        %v399 = vmul.f32 %v271, %v383
        %v400 = vmul.f32 %v272, %v384
        %v401 = vmul.f32 %v273, %v385
        %v402 = vmul.f32 %v274, %v386
        %v403 = vmul.f32 %v275, %v387
        %v404 = vmul.f32 %v276, %v388
        %v405 = vmul.f32 %v277, %v389
        %v406 = vmul.f32 %v278, %v390
        %v407 = vmul.f32 %v279, %v391
        %v408 = vmul.f32 %v280, %v392
        %v409 = vmul.f32 %v281, %v393
        %v410 = vmul.f32 %v282, %v394
        %v411 = vmul.f32 %v283, %v395
        %v412 = vmul.f32 %v284, %v396
        %v413 = vsub.f32 1.0, %v269
        %v414 = vsub.f32 1.0, %v270
        %v415 = vsub.f32 1.0, %v271
        %v416 = vsub.f32 1.0, %v272
        %v417 = vsub.f32 1.0, %v273
        %v418 = vsub.f32 1.0, %v274
        %v419 = vsub.f32 1.0, %v275
        %v420 = vsub.f32 1.0, %v276
        %v421 = vsub.f32 1.0, %v277
        %v422 = vsub.f32 1.0, %v278
        %v423 = vsub.f32 1.0, %v279
        %v424 = vsub.f32 1.0, %v280
        %v425 = vsub.f32 1.0, %v281
        %v426 = vsub.f32 1.0, %v282
        %v427 = vsub.f32 1.0, %v283
        %v428 = vsub.f32 1.0, %v284
        %v429 = vmul.f32 %v365, %v365
        %v430 = vmul.f32 %v366, %v366
        %v431 = vmul.f32 %v367, %v367
        %v432 = vmul.f32 %v368, %v368
        %v433 = vmul.f32 %v369, %v369
        %v434 = vmul.f32 %v370, %v370
        %v435 = vmul.f32 %v371, %v371
        %v436 = vmul.f32 %v372, %v372
        %v437 = vmul.f32 %v373, %v373
        %v438 = vmul.f32 %v374, %v374
        %v439 = vmul.f32 %v375, %v375
        %v440 = vmul.f32 %v376, %v376
        %v441 = vmul.f32 %v377, %v377
        %v442 = vmul.f32 %v378, %v378
        %v443 = vmul.f32 %v379, %v379
        %v444 = vmul.f32 %v380, %v380
        %v445 = vmul.f32 %v413, %v429
        %v446 = vmul.f32 %v414, %v430
        %v447 = vmul.f32 %v415, %v431
        %v448 = vmul.f32 %v416, %v432
        %v449 = vmul.f32 %v417, %v433
        %v450 = vmul.f32 %v418, %v434
        %v451 = vmul.f32 %v419, %v435
        %v452 = vmul.f32 %v420, %v436
        %v453 = vmul.f32 %v421, %v437
        %v454 = vmul.f32 %v422, %v438
        %v455 = vmul.f32 %v423, %v439
        %v456 = vmul.f32 %v424, %v440
        %v457 = vmul.f32 %v425, %v441
        %v458 = vmul.f32 %v426, %v442
        %v459 = vmul.f32 %v427, %v443
        %v460 = vmul.f32 %v428, %v444
        %v461 = vadd.f32 %v397, %v445
        %v462 = vadd.f32 %v398, %v446
        %v463 = vadd.f32 %v399, %v447
        %v464 = vadd.f32 %v400, %v448
        %v465 = vadd.f32 %v401, %v449
        %v466 = vadd.f32 %v402, %v450
        %v467 = vadd.f32 %v403, %v451
        %v468 = vadd.f32 %v404, %v452
        %v469 = vadd.f32 %v405, %v453
        %v470 = vadd.f32 %v406, %v454
        %v471 = vadd.f32 %v407, %v455
        %v472 = vadd.f32 %v408, %v456
        %v473 = vadd.f32 %v409, %v457
        %v474 = vadd.f32 %v410, %v458
        %v475 = vadd.f32 %v411, %v459
        %v476 = vadd.f32 %v412, %v460
        %vm477 = vcmask 7168
        %478 = vst.msk [vmem:[%s235] sm:$0xff] %vm477, %v461
        %479 = vst.msk [vmem:[%s235 + $0x8] sm:$0xff] %vm477, %v462
        %480 = vst.msk [vmem:[%s235 + $0x10] sm:$0xff] %vm477, %v463
        %481 = vst.msk [vmem:[%s235 + $0x18] sm:$0xff] %vm477, %v464
        %482 = vst.msk [vmem:[%s235 + $0x20] sm:$0xff] %vm477, %v465
        %483 = vst.msk [vmem:[%s235 + $0x28] sm:$0xff] %vm477, %v466
        %484 = vst.msk [vmem:[%s235 + $0x30] sm:$0xff] %vm477, %v467
        %485 = vst.msk [vmem:[%s235 + $0x38] sm:$0xff] %vm477, %v468
        %486 = vst.msk [vmem:[%s235 + $0x40] sm:$0xff] %vm477, %v469
        %487 = vst.msk [vmem:[%s235 + $0x48] sm:$0xff] %vm477, %v470
        %488 = vst.msk [vmem:[%s235 + $0x50] sm:$0xff] %vm477, %v471
        %489 = vst.msk [vmem:[%s235 + $0x58] sm:$0xff] %vm477, %v472
        %490 = vst.msk [vmem:[%s235 + $0x60] sm:$0xff] %vm477, %v473
        %491 = vst.msk [vmem:[%s235 + $0x68] sm:$0xff] %vm477, %v474
        %492 = vst.msk [vmem:[%s235 + $0x70] sm:$0xff] %vm477, %v475
        %493 = vst.msk [vmem:[%s235 + $0x78] sm:$0xff] %vm477, %v476
        %s494 = smul.u32 16, %s17
        %p495 = scmp.lt.s32.totalorder %s494, 31
        %s496 = scalar_select %p495, %s494, 31
        %s497 = smul.addr %s496, 8
        %s498 = scalar_lea.vmem %s3, %s497
        // Predicated region
        $region37: #{tpu_custom_call.1} parent=31 // pred_check
          %p499 = pneg %p113
        $region38: #{tpu_custom_call.1} parent=31 // pred_check_branch
          %501 = sbr.rel (%p499) target = $region40
        $region39: #{tpu_custom_call.1} parent=31 // pred_region
          %s502 = smul.u32 16, %s17
        $region40: #{tpu_custom_call.1} parent=31 // pred_fallthru
          _
      $region32: #{tpu_custom_call.1} parent=5 // pred_fallthru
        _
      %p503 = scmp.le.s32.totalorder 2, %s12
      // Predicated region
      $region41: #{tpu_custom_call.1} parent=5 // pred_check
        %p504 = pneg %p503
      $region42: #{tpu_custom_call.1} parent=5 // pred_check_branch
        %506 = sbr.rel (%p504) target = $region44
      $region43: #{tpu_custom_call.1} parent=5 // pred_region
        %s507 = ssub.s32 %s12, 2
        // Predicated region
        $region45: #{tpu_custom_call.1} parent=43 // pred_check
          %p508 = pneg %p119
        $region46: #{tpu_custom_call.1} parent=43 // pred_check_branch
          %510 = sbr.rel (%p508) target = $region48
        $region47: #{tpu_custom_call.1} parent=43 // pred_region
          %s511 = smul.u32 16, %s18
          %p512 = scmp.lt.s32.totalorder %s511, 31
          %s513 = scalar_select %p512, %s511, 31
          %s514 = smul.addr %s513, 8
          %s515 = scalar_lea.vmem %s3, %s514
        $region48: #{tpu_custom_call.1} parent=43 // pred_fallthru
          _
      $region44: #{tpu_custom_call.1} parent=5 // pred_fallthru
        _
    $region6: #{tpu_custom_call.1} parent=1 // loop_footer
      %s16 = sadd.s32 1, %s12
    $region7: #{tpu_custom_call.1} parent=1 // loop_footer_branch
      %11 = sbr.rel target = $region3
    $region8: #{tpu_custom_call.1} parent=1 // loop_exit
      _
    %516 = vsyncpa [#allocation3], 1
    %s517 = scalar_lea.sflag [#allocation3], 1
    %518 = vsyncpa %s517, 1

</llo_original>
